<compile_context>
chip_gen: v5e
topology: v5e:2x2
jax: 0.10.0
libtpu: 0.0.40
codegen_flags: <defaults>
</compile_context>

<pallas_src>
import functools

import jax
import jax.numpy as jnp
from jax.experimental import pallas as pl
from jax.experimental.pallas import tpu as pltpu


def _kl_row_kernel(pred_ref, tgt_ref, out_ref, *, beta, label_softmax,
                   label_beta):
    # pred/tgt: (tile_m, Wb) native width; out: (tile_m, 1) raw per-row
    # sum-over-bins of KLDivLoss(log_softmax(pred*beta), target).
    x = pred_ref[...].astype(jnp.float32) * beta
    x_max = jnp.max(x, axis=-1, keepdims=True)
    x_sh = x - x_max
    lse = jnp.log(jnp.sum(jnp.exp(x_sh), axis=-1, keepdims=True))
    log_pt = x_sh - lse                                 # log_softmax(pred*beta)

    t = tgt_ref[...].astype(jnp.float32)
    if label_softmax:
        tl = t * label_beta
        tl_sh = tl - jnp.max(tl, axis=-1, keepdims=True)
        te = jnp.exp(tl_sh)
        ts = jnp.sum(te, axis=-1, keepdims=True)
        # KL = softmax(tl) * (log_softmax(tl) - log_pt)
        #    = (te / ts) * (tl_sh - log(ts) - log_pt)
        # Fold the exact 1/ts into the final per-row scale (one divide per
        # row, exact) instead of normalizing t element-wise.
        inner = te * (tl_sh - jnp.log(ts) - log_pt)
        out_ref[...] = jnp.sum(inner, axis=-1, keepdims=True) / ts
    else:
        # xlogy(t, t): exactly 0 where t == 0 (SimCC labels contain zeros).
        tlogt = jnp.where(t > 0, t * jnp.log(jnp.where(t > 0, t, 1.0)), 0.0)
        kl = tlogt - t * log_pt
        out_ref[...] = jnp.sum(kl, axis=-1, keepdims=True)


def _round_up(x, m):
    return (x + m - 1) // m * m


@functools.lru_cache(maxsize=1)
def _is_v7x():
    try:
        return "v7" in jax.devices()[0].device_kind.lower()
    except Exception:
        return False


def _branch_row_kl(pred2d, tgt2d, *, beta, label_softmax, label_beta):
    """Per-row sum-over-bins KL for one SimCC branch. Returns shape (M,)."""
    M, W = pred2d.shape
    itemsize = max(jnp.dtype(pred2d.dtype).itemsize,
                   jnp.dtype(tgt2d.dtype).itemsize)

    # Row-tile sizing: 2 inputs x 2 double-buffers under ~16 MiB; cap at 1024
    # rows (512 on v7x: better megacore balance for small grids, still >=85%
    # of HBM roofline).  Multiple of 8 (sublane) is sufficient since the lane
    # dim is the full array width.
    cap = 512 if _is_v7x() else 1024
    budget = 16 * 1024 * 1024
    tile_m = budget // (2 * 2 * W * itemsize)
    tile_m = max(8, min(cap, (tile_m // 8) * 8))
    tile_m = min(tile_m, _round_up(M, 8))
    grid_m = pl.cdiv(M, tile_m)

    # Actual VMEM footprint: double-buffered inputs + lane-padded (tile_m, 1)
    # output buffers; add slack, stay well under v7x's 64 MiB physical VMEM.
    vmem_need = 2 * 2 * tile_m * W * itemsize + 2 * tile_m * 128 * 4
    vmem_limit = int(min(48 << 20, max(16 << 20, vmem_need * 5 // 4 + (2 << 20))))

    kernel = functools.partial(_kl_row_kernel, beta=beta,
                               label_softmax=label_softmax,
                               label_beta=label_beta)
    rows = pl.pallas_call(
        kernel,
        out_shape=jax.ShapeDtypeStruct((M, 1), jnp.float32),
        grid_spec=pltpu.PrefetchScalarGridSpec(
            num_scalar_prefetch=0,
            grid=(grid_m,),
            in_specs=[
                pl.BlockSpec((tile_m, W), lambda i: (i, 0)),
                pl.BlockSpec((tile_m, W), lambda i: (i, 0)),
            ],
            out_specs=pl.BlockSpec((tile_m, 1), lambda i: (i, 0)),
        ),
        compiler_params=pltpu.CompilerParams(
            dimension_semantics=("parallel",),
            vmem_limit_bytes=vmem_limit),
    )(pred2d, tgt2d)
    return rows[:, 0]


def kl_discret_loss(pred_simcc, gt_simcc, target_weight, *, beta=1.0,
                    label_softmax=False, label_beta=10.0,
                    use_target_weight=True, mask=None, mask_weight=1.0):
    """Pallas-backed equivalent of KLDiscretLoss.forward."""
    N, K, _ = pred_simcc[0].shape
    M = N * K

    if use_target_weight:
        base_w = target_weight.reshape(-1).astype(jnp.float32)
    else:
        base_w = jnp.ones((M,), jnp.float32)
    if mask is not None:
        # Matches t_loss.reshape(N, K)[:, mask] *= mask_weight under the
        # row-major (N*K) flattening used throughout (commutes with the
        # weight multiply before the final sum).
        mvec = jnp.ones((K,), jnp.float32).at[jnp.asarray(mask)].set(mask_weight)
        base_w = base_w * jnp.tile(mvec, N)

    loss = jnp.zeros((), jnp.float32)
    for pred, target in zip(pred_simcc, gt_simcc):
        Wb = int(pred.shape[-1])
        rows = _branch_row_kl(pred.reshape(M, Wb), target.reshape(M, Wb),
                              beta=beta, label_softmax=label_softmax,
                              label_beta=label_beta)
        # torch.mean(..., dim=1) -> 1/Wb, applied on the tiny M-length vector.
        loss = loss + jnp.sum(rows * base_w) / float(Wb)
    return loss / K


def _ref_loss(pred_simcc, gt_simcc, target_weight, *, beta=1.0,
              label_softmax=False, label_beta=10.0, use_target_weight=True,
              mask=None, mask_weight=1.0):
    """Plain-JAX reference mirroring the PyTorch module."""
    N, K, _ = pred_simcc[0].shape
    weight = target_weight.reshape(-1) if use_target_weight else 1.0
    loss = 0.0
    for pred, target in zip(pred_simcc, gt_simcc):
        p = pred.reshape(-1, pred.shape[-1]) * beta
        log_pt = jax.nn.log_softmax(p, axis=1)
        t = target.reshape(-1, target.shape[-1])
        if label_softmax:
            t = jax.nn.softmax(t * label_beta, axis=1)
        kl = (jnp.where(t > 0, t * jnp.log(jnp.where(t > 0, t, 1.0)), 0.0)
              - t * log_pt)
        t_loss = jnp.mean(kl, axis=1) * weight
        if mask is not None:
            t_loss = t_loss.reshape(N, K)
            t_loss = t_loss.at[:, jnp.asarray(mask)].multiply(mask_weight)
            t_loss = t_loss.reshape(-1)
        loss = loss + jnp.sum(t_loss)
    return loss / K


if __name__ == "__main__":
    key = jax.random.PRNGKey(0)
    N, K, Wx, Wy = 2, 4, 48, 32

    k1, k2, k3, k4, k5 = jax.random.split(key, 5)
    pred_x = jax.random.normal(k1, (N, K, Wx), jnp.float32)
    pred_y = jax.random.normal(k2, (N, K, Wy), jnp.float32)
    # SimCC Gaussian-smoothed labels are non-negative distributions.
    gt_x = jax.nn.softmax(jax.random.normal(k3, (N, K, Wx), jnp.float32) * 3.0,
                          axis=-1)
    gt_y = jax.nn.softmax(jax.random.normal(k4, (N, K, Wy), jnp.float32) * 3.0,
                          axis=-1)
    target_weight = jax.random.uniform(k5, (N, K), jnp.float32)

    # 1) Default module configuration.
    loss = kl_discret_loss((pred_x, pred_y), (gt_x, gt_y), target_weight,
                           beta=1.0, label_softmax=False, label_beta=10.0,
                           use_target_weight=True, mask=None, mask_weight=1.0)
    loss = jax.block_until_ready(loss)
    ref = _ref_loss((pred_x, pred_y), (gt_x, gt_y), target_weight,
                    beta=1.0, label_softmax=False, label_beta=10.0)
    assert jnp.allclose(loss, ref, rtol=1e-4, atol=1e-5), (loss, ref)

    # 2) label_softmax path (now exact reciprocal -> tight tolerance).
    loss2 = kl_discret_loss((pred_x, pred_y), (gt_x, gt_y), target_weight,
                            beta=1.0, label_softmax=True, label_beta=10.0,
                            use_target_weight=True)
    loss2 = jax.block_until_ready(loss2)
    ref2 = _ref_loss((pred_x, pred_y), (gt_x, gt_y), target_weight,
                     beta=1.0, label_softmax=True, label_beta=10.0)
    assert jnp.allclose(loss2, ref2, rtol=1e-4, atol=1e-5), (loss2, ref2)

    # 3) mask + mask_weight path.
    loss3 = kl_discret_loss((pred_x, pred_y), (gt_x, gt_y), target_weight,
                            beta=1.0, label_softmax=False,
                            use_target_weight=True, mask=[1, 3],
                            mask_weight=0.5)
    loss3 = jax.block_until_ready(loss3)
    ref3 = _ref_loss((pred_x, pred_y), (gt_x, gt_y), target_weight,
                     beta=1.0, label_softmax=False, use_target_weight=True,
                     mask=[1, 3], mask_weight=0.5)
    assert jnp.allclose(loss3, ref3, rtol=1e-4, atol=1e-5), (loss3, ref3)

    print("KERNEL_OK")
</pallas_src>

<mosaic_0001>
module attributes {stable_mosaic.version = 11 : i64} {
  func.func @_kl_row_kernel(%arg0: i32, %arg1: memref<8x48xf32, #tpu.memory_space<vmem>>, %arg2: memref<8x48xf32, #tpu.memory_space<vmem>>, %arg3: memref<8x1xf32, #tpu.memory_space<vmem>>) attributes {dimension_semantics = [#tpu.dimension_semantics<parallel>], iteration_bounds = array<i64: 1>, scalar_prefetch = 0 : i64, scratch_operands = 0 : i64, tpu.core_type = #tpu.core_type<tc>, window_params = [{transform_indices = @transform_0, window_bounds = array<i64: 8, 48>}, {transform_indices = @transform_1, window_bounds = array<i64: 8, 48>}, {transform_indices = @transform_2, window_bounds = array<i64: 8, 1>}]} {
    %c0 = arith.constant 0 : index
    %c0_0 = arith.constant 0 : index
    %0 = vector.load %arg1[%c0, %c0_0] : memref<8x48xf32, #tpu.memory_space<vmem>>, vector<8x48xf32>
    %cst = arith.constant 1.000000e+00 : f32
    %1 = vector.broadcast %cst : f32 to vector<8x48xf32>
    %2 = arith.mulf %0, %1 : vector<8x48xf32>
    %cst_1 = arith.constant dense<0xFF800000> : vector<8xf32>
    %3 = vector.multi_reduction <maximumf>, %2, %cst_1 [1] : vector<8x48xf32> to vector<8xf32>
    %4 = vector.shape_cast %3 : vector<8xf32> to vector<8x1xf32>
    %5 = vector.broadcast %4 : vector<8x1xf32> to vector<8x48xf32>
    %6 = arith.subf %2, %5 : vector<8x48xf32>
    %7 = math.exp %6 : vector<8x48xf32>
    %cst_2 = arith.constant dense<0.000000e+00> : vector<8xf32>
    %8 = vector.multi_reduction <add>, %7, %cst_2 [1] : vector<8x48xf32> to vector<8xf32>
    %9 = vector.shape_cast %8 : vector<8xf32> to vector<8x1xf32>
    %10 = math.log %9 : vector<8x1xf32>
    %11 = vector.broadcast %10 : vector<8x1xf32> to vector<8x48xf32>
    %12 = arith.subf %6, %11 : vector<8x48xf32>
    %c0_3 = arith.constant 0 : index
    %c0_4 = arith.constant 0 : index
    %13 = vector.load %arg2[%c0_3, %c0_4] : memref<8x48xf32, #tpu.memory_space<vmem>>, vector<8x48xf32>
    %cst_5 = arith.constant 0.000000e+00 : f32
    %14 = vector.broadcast %cst_5 : f32 to vector<8x48xf32>
    %15 = arith.cmpf ogt, %13, %14 : vector<8x48xf32>
    %cst_6 = arith.constant 0.000000e+00 : f32
    %16 = vector.broadcast %cst_6 : f32 to vector<8x48xf32>
    %17 = arith.cmpf ogt, %13, %16 : vector<8x48xf32>
    %cst_7 = arith.constant 1.000000e+00 : f32
    %18 = vector.broadcast %cst_7 : f32 to vector<8x48xf32>
    %19 = arith.select %17, %13, %18 : vector<8x48xi1>, vector<8x48xf32>
    %20 = math.log %19 : vector<8x48xf32>
    %21 = arith.mulf %13, %20 : vector<8x48xf32>
    %cst_8 = arith.constant 0.000000e+00 : f32
    %22 = vector.broadcast %cst_8 : f32 to vector<8x48xf32>
    %23 = arith.select %15, %21, %22 : vector<8x48xi1>, vector<8x48xf32>
    %24 = arith.mulf %13, %12 : vector<8x48xf32>
    %25 = arith.subf %23, %24 : vector<8x48xf32>
    %cst_9 = arith.constant dense<0.000000e+00> : vector<8xf32>
    %26 = vector.multi_reduction <add>, %25, %cst_9 [1] : vector<8x48xf32> to vector<8xf32>
    %27 = vector.shape_cast %26 : vector<8xf32> to vector<8x1xf32>
    %c0_10 = arith.constant 0 : index
    %c0_11 = arith.constant 0 : index
    %28 = vector.load %arg3[%c0_10, %c0_11] : memref<8x1xf32, #tpu.memory_space<vmem>>, vector<8x1xf32>
    tpu.vector_store %arg3[%c0_10, %c0_11], %27 {strides = array<i32>} : memref<8x1xf32, #tpu.memory_space<vmem>>, vector<8x1xf32>,
    return
  }
  func.func @transform_0(%arg0: i32) -> (i32, i32) {
    %c0_i32 = arith.constant 0 : i32
    %c0_i32_0 = arith.constant 0 : i32
    return %arg0, %c0_i32 : i32, i32
  }
  func.func @transform_1(%arg0: i32) -> (i32, i32) {
    %c0_i32 = arith.constant 0 : i32
    %c0_i32_0 = arith.constant 0 : i32
    return %arg0, %c0_i32 : i32, i32
  }
  func.func @transform_2(%arg0: i32) -> (i32, i32) {
    %c0_i32 = arith.constant 0 : i32
    %c0_i32_0 = arith.constant 0 : i32
    return %arg0, %c0_i32 : i32, i32
  }
}

</mosaic_0001>

<llo_original>
// kernel: tpu_custom_call.1
$region0: #{tpu_custom_call.1}
  #allocation0 [shape = 'u32[]', space=smem, size = 0x4, offset = 0x4, fixed_abs, tag = 'smem constant byte address 0x4 - core index']
  #allocation1 [shape = 'u32[72,128]{1,0:T(1,128)}', space=vmem, size = 0x9000, scoped, tag = 'internal scratch']
  %s0 = inlined_call_operand.hbm [shape: f32[8,48], index: 0, kind: input, shape index: {}]
  %s1 = inlined_call_operand.hbm [shape: f32[8,48], index: 1, kind: input, shape index: {}]
  %s2 = inlined_call_operand.vmem [shape: f32[8,1], index: 2, kind: output, shape index: {}]
  %s3 = sld [smem:[#allocation0]]
  $region26: #{tpu_custom_call.1} parent=0
    _
  %s5 = ssub.s32 1, %s3
  %s6 = scalar_select 0, %s5, %s3
  $region1: #{tpu_custom_call.1} parent=0
    #allocation2 [shape = 'u8[4096]{0}', space=vmem, size = 0x1000, scoped, tag = 'input window, operand 0, single buffered']
    #allocation3 [shape = 's32[1]{0}', space=sflag, size = 0x4, scoped, tag = 'scoped memory for tpu_custom_call.1']
    #allocation4 [shape = 'u8[4096]{0}', space=vmem, size = 0x1000, scoped, tag = 'input window, operand 1, single buffered']
    #allocation5 [shape = 's32[1]{0}', space=sflag, size = 0x4, scoped, tag = 'scoped memory for tpu_custom_call.1']
    %7 = vsyncpa [#allocation3], 0
    %8 = vsyncpa [#allocation5], 0
    // Predicated region
    $region2: #{tpu_custom_call.1} parent=1 // pred_check
      _
    $region3: #{tpu_custom_call.1} parent=1 // pred_check_branch
      %10 = sbr.rel (0) target = $region5
    $region4: #{tpu_custom_call.1} parent=1 // pred_region
      %12 = vsyncadd [#allocation3], 0
      %s14 = sshll.u32 %s0, 4
      %s15 = int_to_ptr.hbm [resolvable:$true] %s14
      %s16 = sshll.u32 [#allocation2], 4
      %s17 = int_to_ptr.vmem [resolvable:$true] %s16
      %19 = dma.hbm_to_vmem [thread:$0]  %s15, 128, %s17, [#allocation3]
    $region5: #{tpu_custom_call.1} parent=1 // pred_fallthru
      _
    // Predicated region
    $region6: #{tpu_custom_call.1} parent=1 // pred_check
      _
    $region7: #{tpu_custom_call.1} parent=1 // pred_check_branch
      %21 = sbr.rel (0) target = $region9
    $region8: #{tpu_custom_call.1} parent=1 // pred_region
      %23 = vsyncadd [#allocation5], 0
      %s25 = sshll.u32 %s1, 4
      %s26 = int_to_ptr.hbm [resolvable:$true] %s25
      %s27 = sshll.u32 [#allocation4], 4
      %s28 = int_to_ptr.vmem [resolvable:$true] %s27
      %30 = dma.hbm_to_vmem [thread:$0]  %s26, 128, %s28, [#allocation5]
    $region9: #{tpu_custom_call.1} parent=1 // pred_fallthru
      _
    // Predicated region
    $region10: #{tpu_custom_call.1} parent=1 // pred_check
      _
    $region11: #{tpu_custom_call.1} parent=1 // pred_check_branch
      %32 = sbr.rel (0) target = $region13
    $region12: #{tpu_custom_call.1} parent=1 // pred_region
      %34 = dma.done [#allocation3], 128
    $region13: #{tpu_custom_call.1} parent=1 // pred_fallthru
      _
    // Predicated region
    $region14: #{tpu_custom_call.1} parent=1 // pred_check
      _
    $region15: #{tpu_custom_call.1} parent=1 // pred_check_branch
      %36 = sbr.rel (0) target = $region17
    $region16: #{tpu_custom_call.1} parent=1 // pred_region
      %38 = dma.done [#allocation5], 128
    $region17: #{tpu_custom_call.1} parent=1 // pred_fallthru
      _
    %v39 = vld [vmem:[#allocation2] sm:$0xff]
    %vm40 = vcmask 392192
    %v41 = vsel %vm40, %v39, -inf
    %42 = vmax.xlane.f32.xlu0 %v41
    %v43 = vpop.xlane.xlu0 %42
    %v44 = vsub.f32 %v39, %v43
    %v45 = vmul.f32 %v44, 1.442695
    %v46 = vpow.pop %v45
    %v47 = vsel %vm40, %v46, 0.0
    %48 = vadd.xlane.f32.xlu0 %v47
    %v49 = vpop.xlane.xlu0 %48
    %v50 = vlog2.pop %v49
    %v51 = vmul.f32 %v50, 0.6931472
    %v52 = vsub.f32 %v44, %v51
    %v53 = vld [vmem:[#allocation4] sm:$0xff]
    %vm54 = vcmp.gt.f32.partialorder %v53, 0.0
    %v55 = vsel %vm54, %v53, 1.0
    %v56 = vlog2.pop %v55
    %v57 = vmul.f32 %v56, 0.6931472
    %v58 = vmul.f32 %v53, %v57
    %v59 = vsel %vm54, %v58, 0.0
    %v60 = vmul.f32 %v53, %v52
    %v61 = vsub.f32 %v59, %v60
    %v62 = vsel %vm40, %v61, 0.0
    %63 = vadd.xlane.f32.xlu0 %v62
    %v64 = vpop.xlane.xlu0 %63
    %vm65 = vcmask 7168
    %66 = vst.msk [vmem:[%s2] sm:$0xff] %vm65, %v64
    // Predicated region
    $region18: #{tpu_custom_call.1} parent=1 // pred_check
      _
    $region19: #{tpu_custom_call.1} parent=1 // pred_check_branch
      %68 = sbr.rel (0) target = $region21
    $region20: #{tpu_custom_call.1} parent=1 // pred_region
      _
    $region21: #{tpu_custom_call.1} parent=1 // pred_fallthru
      _
    // Predicated region
    $region22: #{tpu_custom_call.1} parent=1 // pred_check
      _
    $region23: #{tpu_custom_call.1} parent=1 // pred_check_branch
      %70 = sbr.rel (0) target = $region25
    $region24: #{tpu_custom_call.1} parent=1 // pred_region
      _
    $region25: #{tpu_custom_call.1} parent=1 // pred_fallthru
      _
    %71 = vsyncpa [#allocation3], 1
    %72 = vsyncpa [#allocation5], 1

</llo_original>
